<compile_context>
chip_gen: v6e
topology: v6e:2x2x1
jax: 0.10.0
libtpu: 0.0.40
codegen_flags: <defaults>
</compile_context>

<pallas_src>
import functools

import jax
import jax.numpy as jnp
from jax.experimental import pallas as pl
from jax.experimental.pallas import tpu as pltpu


def _round_up(x, m):
    return -(-x // m) * m


# --------------------------- Pallas kernel ----------------------------------
def _sa_mlp_kernel(x_ref, w1_ref, b1_ref, w2_ref, b2_ref, o_ref, *, nsample):
    # x_ref : (Cin_pad, K*TG) bf16   channels on sublanes, (k, group) on lanes
    # w1_ref: (C1, Cin_pad)   bf16   folded conv1+bn1 (W @ x orientation)
    # b1_ref: (C1, 1)         f32
    # w2_ref: (C2, C1)        bf16   folded conv2+bn2
    # b2_ref: (C2, 1)         f32
    # o_ref : (C2, TG)        f32    lane-dense output tile
    tg = o_ref.shape[1]

    # One matmul per layer over the whole (Cin, K*TG) slab; both dots are
    # single-pass bf16 MXU ops accumulating in f32.  Biases broadcast
    # implicitly from (C, 1) — no materialized (C, N) broadcast temps.
    h = jnp.dot(w1_ref[...], x_ref[...],
                preferred_element_type=jnp.float32)              # (C1, K*TG)
    h = jnp.maximum(h + b1_ref[...], 0.0)                        # relu(bn1(conv1))
    h = jnp.dot(w2_ref[...], h.astype(jnp.bfloat16),
                preferred_element_type=jnp.float32)              # (C2, K*TG)
    h = jnp.maximum(h + b2_ref[...], 0.0)                        # relu(bn2(conv2))

    # Max over the neighborhood: unrolled maximum over lane-aligned K slabs
    # (TG is a multiple of 128, so every slice stays on vreg lane boundaries).
    acc = h[:, 0:tg]
    for k in range(1, nsample):
        acc = jnp.maximum(acc, h[:, k * tg:(k + 1) * tg])
    o_ref[...] = acc.astype(o_ref.dtype)


def _pick_tiling(G, target=2048):
    """Pick (tile_groups, padded_G).  tile_groups is a multiple of 128 (lane-
    dense, unmasked output stores); padded_G = steps * tile_groups with an
    EVEN step count whenever steps > 1 (both v7x TensorCores stay busy)."""
    g128 = _round_up(G, 128)
    if g128 <= 128:
        return 128, 128
    steps = max(2, -(-g128 // target))
    steps += steps % 2                       # even step count for v7x megacore
    tg = _round_up(-(-g128 // steps), 128)
    return tg, steps * tg


def sa_mlp_maxpool(feats, w1, b1, w2, b2, *, tile_groups=None):
    """feats: [B, S, K, Cin] -> [B, S, C2] (f32):
       out[b,s] = max_k relu(bn2(W2 @ relu(bn1(W1 @ feats[b,s,k]))))."""
    B, S, K, Cin = feats.shape
    C1 = w1.shape[0]
    C2 = w2.shape[0]
    G = B * S

    if tile_groups is not None:
        assert tile_groups % 128 == 0, "tile_groups must be a multiple of 128"
        tg, G_pad = tile_groups, _round_up(G, tile_groups)
    else:
        tg, G_pad = _pick_tiling(G)
    n_tiles = G_pad // tg
    cin_pad = _round_up(max(Cin, 8), 8)      # pad Cin (6 -> 8): zero rows are inert

    # bf16 BEFORE the relayout of the dominant tensor (halves that HBM pass);
    # zero-pad groups -> G_pad and channels -> cin_pad, then interleave to the
    # kernel layout: lanes ordered (tile, k, group) so every grid step gets a
    # contiguous (Cin_pad, K*TG) slab.
    x = feats.astype(jnp.bfloat16).reshape(G, K, Cin)
    x = jnp.pad(x, ((0, G_pad - G), (0, 0), (0, cin_pad - Cin)))
    x = x.reshape(n_tiles, tg, K, cin_pad).transpose(3, 0, 2, 1)
    x = x.reshape(cin_pad, n_tiles * K * tg)
    # TODO(synk): fuse this relayout into the neighborhood gather itself
    # (gather from a channels-major [C,B,N] source) to drop the bf16 copy pass.

    w1p = jnp.pad(w1.astype(jnp.bfloat16), ((0, 0), (0, cin_pad - Cin)))
    w2b = w2.astype(jnp.bfloat16)
    b1c = jnp.asarray(b1, jnp.float32).reshape(C1, 1)
    b2c = jnp.asarray(b2, jnp.float32).reshape(C2, 1)

    # NOTE: x is the only large HBM stream; if xprof ever shows exposed DMA
    # (most likely on v5e), pipeline_mode=pl.Buffered(3) on its spec is the knob.
    out = pl.pallas_call(
        functools.partial(_sa_mlp_kernel, nsample=K),
        out_shape=jax.ShapeDtypeStruct((C2, G_pad), jnp.float32),
        grid_spec=pltpu.PrefetchScalarGridSpec(
            num_scalar_prefetch=0,
            grid=(n_tiles,),
            in_specs=[
                pl.BlockSpec((cin_pad, K * tg), lambda i: (0, i)),
                pl.BlockSpec((C1, cin_pad), lambda i: (0, 0)),
                pl.BlockSpec((C1, 1), lambda i: (0, 0)),
                pl.BlockSpec((C2, C1), lambda i: (0, 0)),
                pl.BlockSpec((C2, 1), lambda i: (0, 0)),
            ],
            out_specs=pl.BlockSpec((C2, tg), lambda i: (0, i)),
        ),
        compiler_params=pltpu.CompilerParams(
            dimension_semantics=("parallel",),
            vmem_limit_bytes=32 * 1024 * 1024),
    )(x, w1p, b1c, w2b, b2c)                 # (C2, G_pad)

    return out[:, :G].T.reshape(B, S, C2)    # drop group padding, one transpose


# --------------------------- plain-JAX glue ----------------------------------
def square_distance(src, dst):
    # src [B,S,3], dst [B,N,3] -> [B,S,N]
    return jnp.sum((src[:, :, None, :] - dst[:, None, :, :]) ** 2, axis=-1)


def index_points(points, idx):
    # points [B,N,C], idx [B, ...] -> [B, ..., C]
    B = points.shape[0]
    idx_flat = idx.reshape(B, -1)
    gathered = points[jnp.arange(B)[:, None], idx_flat]       # [B, M, C]
    return gathered.reshape(idx.shape + (points.shape[-1],))


def farthest_point_sample(xyz, npoint):
    B, N, _ = xyz.shape

    def body(i, state):
        centroids, distance, farthest = state
        centroids = centroids.at[:, i].set(farthest)
        centroid = xyz[jnp.arange(B), farthest][:, None, :]   # [B,1,3]
        dist = jnp.sum((xyz - centroid) ** 2, axis=-1)        # [B,N]
        distance = jnp.minimum(distance, dist)
        farthest = jnp.argmax(distance, axis=-1).astype(jnp.int32)
        return centroids, distance, farthest

    centroids = jnp.zeros((B, npoint), jnp.int32)
    distance = jnp.full((B, N), 1e10, dtype=xyz.dtype)
    # TODO(synk): PyTorch FPS starts from a random index; we use 0 for determinism.
    farthest = jnp.zeros((B,), jnp.int32)
    centroids, _, _ = jax.lax.fori_loop(0, npoint, body,
                                        (centroids, distance, farthest))
    return centroids


def _group_features(xyz, points, npoint, nsample):
    """Shared FPS + knn + grouping glue. Returns (new_xyz, feats[B,S,K,3+D])."""
    fps_idx = farthest_point_sample(xyz, npoint)              # [B,S]
    new_xyz = index_points(xyz, fps_idx)                      # [B,S,3]

    # knn via partial top-k on negated squared distances (no full argsort).
    dists = square_distance(new_xyz, xyz)                     # [B,S,N]
    _, idx = jax.lax.top_k(-dists, nsample)                   # [B,S,K]

    # single fused gather of [xyz | points], then re-center the xyz channels.
    all_feats = jnp.concatenate([xyz, points], axis=-1)       # [B,N,3+D]
    grouped = index_points(all_feats, idx)                    # [B,S,K,3+D]
    grouped_xyz_norm = grouped[..., :3] - new_xyz[:, :, None, :]
    feats = jnp.concatenate([grouped_xyz_norm, grouped[..., 3:]], axis=-1)
    return new_xyz, feats


def transition_down_forward(xyz, points, params, *, npoint, nsample,
                            tile_groups=None):
    """xyz: [B,N,3], points: [B,N,D] -> (new_xyz [B,S,3], new_points [B,S,C_out])."""
    new_xyz, feats = _group_features(xyz, points, npoint, nsample)
    new_points = sa_mlp_maxpool(feats,
                                params["w1"], params["b1"],
                                params["w2"], params["b2"],
                                tile_groups=tile_groups)      # [B,S,C2]
    return new_xyz, new_points


# ------------------------ deterministic parameter init -----------------------
def init_params(key, channels):
    """channels = [Cin, C1, C2]; Conv2d(1x1)+BatchNorm2d folded (eval mode).
    Weights stored channels-major: (C_out, C_in) bf16; biases as (C_out, 1) f32."""
    cin, c1, c2 = channels
    keys = jax.random.split(key, 8)
    eps = 1e-5

    def conv_bn(kw, kb, kg, kbe, ci, co):
        w = jax.random.normal(kw, (co, ci), jnp.float32) / jnp.sqrt(ci)  # Conv2d weight [co,ci,1,1]
        b = 0.05 * jax.random.normal(kb, (co,), jnp.float32)             # Conv2d bias
        gamma = 1.0 + 0.1 * jax.random.normal(kg, (co,), jnp.float32)    # BN weight
        beta = 0.05 * jax.random.normal(kbe, (co,), jnp.float32)         # BN bias
        # TODO(synk): eval-mode BN folded assuming running_mean=0, running_var=1.
        scale = gamma / jnp.sqrt(1.0 + eps)
        w_f = w * scale[:, None]                                         # [co, ci]
        b_f = (b * scale + beta)[:, None]                                # [co, 1]
        return w_f, b_f

    w1, b1 = conv_bn(keys[0], keys[1], keys[2], keys[3], cin, c1)
    w2, b2 = conv_bn(keys[4], keys[5], keys[6], keys[7], c1, c2)
    # Both weight matrices stream as bf16 so both MXU dots are single-pass
    # bf16 (f32 accumulation in-kernel); biases stay f32.
    return {"w1": w1.astype(jnp.bfloat16), "b1": b1,
            "w2": w2.astype(jnp.bfloat16), "b2": b2}


if __name__ == "__main__":
    key = jax.random.PRNGKey(0)
    k_xyz, k_pts, k_par = jax.random.split(key, 3)

    # TransitionDown(k=16, nneighbor=8, channels=[6, 32, 32])
    B, N = 2, 64
    npoint, nsample = 16, 8
    channels = [6, 32, 32]          # channels[0] = 3 (xyz offset) + D (point feats)
    D = channels[0] - 3

    xyz = jax.random.normal(k_xyz, (B, N, 3), dtype=jnp.float32)
    points = jax.random.normal(k_pts, (B, N, D), dtype=jnp.float32)
    params = init_params(k_par, channels)

    fwd = jax.jit(functools.partial(
        transition_down_forward, npoint=npoint, nsample=nsample))
    new_xyz, new_points = fwd(xyz, points, params)
    jax.block_until_ready((new_xyz, new_points))

    assert new_xyz.shape == (B, npoint, 3)
    assert new_points.shape == (B, npoint, channels[-1])
    assert bool(jnp.all(jnp.isfinite(new_points)))

    # pure-JAX reference of the MLP + max-pool path (same FPS/knn glue, same
    # bf16 rounding of the streamed features / layer-2 handoff) for a check.
    def reference_forward(xyz, points, params):
        new_xyz_r, feats = _group_features(xyz, points, npoint, nsample)
        feats = feats.astype(jnp.bfloat16).astype(jnp.float32)
        w1 = params["w1"].astype(jnp.float32); b1 = params["b1"][:, 0]
        w2 = params["w2"].astype(jnp.float32); b2 = params["b2"][:, 0]
        h = jnp.maximum(jnp.einsum("bskc,oc->bsko", feats, w1) + b1, 0.0)
        h = h.astype(jnp.bfloat16).astype(jnp.float32)   # matches kernel's bf16 layer-2 input
        h = jnp.maximum(jnp.einsum("bsko,po->bskp", h, w2) + b2, 0.0)
        return new_xyz_r, h.max(axis=2)

    ref_xyz, ref_points = jax.jit(reference_forward)(xyz, points, params)
    assert jnp.allclose(new_xyz, ref_xyz)
    assert bool(jnp.allclose(new_points, ref_points, rtol=2e-2, atol=2e-2))
    print("KERNEL_OK")
</pallas_src>

<mosaic_0001>
module attributes {stable_mosaic.version = 11 : i64} {
  func.func @_sa_mlp_kernel(%arg0: i32, %arg1: memref<8x1024xbf16, #tpu.memory_space<vmem>>, %arg2: memref<32x8xbf16, #tpu.memory_space<vmem>>, %arg3: memref<32x1xf32, #tpu.memory_space<vmem>>, %arg4: memref<32x32xbf16, #tpu.memory_space<vmem>>, %arg5: memref<32x1xf32, #tpu.memory_space<vmem>>, %arg6: memref<32x128xf32, #tpu.memory_space<vmem>>) attributes {dimension_semantics = [#tpu.dimension_semantics<parallel>], iteration_bounds = array<i64: 1>, scalar_prefetch = 0 : i64, scratch_operands = 0 : i64, tpu.core_type = #tpu.core_type<tc>, window_params = [{transform_indices = @transform_0, window_bounds = array<i64: 8, 1024>}, {pipeline_mode = #tpu.pipeline_mode<synchronous>, transform_indices = @transform_1, window_bounds = array<i64: 32, 8>}, {pipeline_mode = #tpu.pipeline_mode<synchronous>, transform_indices = @transform_2, window_bounds = array<i64: 32, 1>}, {pipeline_mode = #tpu.pipeline_mode<synchronous>, transform_indices = @transform_3, window_bounds = array<i64: 32, 32>}, {pipeline_mode = #tpu.pipeline_mode<synchronous>, transform_indices = @transform_4, window_bounds = array<i64: 32, 1>}, {transform_indices = @transform_5, window_bounds = array<i64: 32, 128>}]} {
    %c0 = arith.constant 0 : index
    %c0_0 = arith.constant 0 : index
    %0 = vector.load %arg2[%c0, %c0_0] : memref<32x8xbf16, #tpu.memory_space<vmem>>, vector<32x8xbf16>
    %c0_1 = arith.constant 0 : index
    %c0_2 = arith.constant 0 : index
    %1 = vector.load %arg1[%c0_1, %c0_2] : memref<8x1024xbf16, #tpu.memory_space<vmem>>, vector<8x1024xbf16>
    %cst = arith.constant dense<0.000000e+00> : vector<32x1024xf32>
    %2 = tpu.matmul %0, %1, %cst {dimension_numbers = #tpu.dot_dimension_numbers<[1], [0], [0], [1], [0, 0, 1, 1], [], []>} : vector<32x8xbf16>, vector<8x1024xbf16>, vector<32x1024xf32> -> vector<32x1024xf32>
    %c0_3 = arith.constant 0 : index
    %c0_4 = arith.constant 0 : index
    %3 = vector.load %arg3[%c0_3, %c0_4] : memref<32x1xf32, #tpu.memory_space<vmem>>, vector<32x1xf32>
    %4 = vector.broadcast %3 : vector<32x1xf32> to vector<32x1024xf32>
    %5 = arith.addf %2, %4 : vector<32x1024xf32>
    %cst_5 = arith.constant 0.000000e+00 : f32
    %6 = vector.broadcast %cst_5 : f32 to vector<32x1024xf32>
    %7 = arith.maximumf %5, %6 : vector<32x1024xf32>
    %c0_6 = arith.constant 0 : index
    %c0_7 = arith.constant 0 : index
    %8 = vector.load %arg4[%c0_6, %c0_7] : memref<32x32xbf16, #tpu.memory_space<vmem>>, vector<32x32xbf16>
    %9 = arith.truncf %7 : vector<32x1024xf32> to vector<32x1024xbf16>
    %cst_8 = arith.constant dense<0.000000e+00> : vector<32x1024xf32>
    %10 = tpu.matmul %8, %9, %cst_8 {dimension_numbers = #tpu.dot_dimension_numbers<[1], [0], [0], [1], [0, 0, 1, 1], [], []>} : vector<32x32xbf16>, vector<32x1024xbf16>, vector<32x1024xf32> -> vector<32x1024xf32>
    %c0_9 = arith.constant 0 : index
    %c0_10 = arith.constant 0 : index
    %11 = vector.load %arg5[%c0_9, %c0_10] : memref<32x1xf32, #tpu.memory_space<vmem>>, vector<32x1xf32>
    %12 = vector.broadcast %11 : vector<32x1xf32> to vector<32x1024xf32>
    %13 = arith.addf %10, %12 : vector<32x1024xf32>
    %cst_11 = arith.constant 0.000000e+00 : f32
    %14 = vector.broadcast %cst_11 : f32 to vector<32x1024xf32>
    %15 = arith.maximumf %13, %14 : vector<32x1024xf32>
    %16 = vector.extract_strided_slice %15 {offsets = [0, 0], sizes = [32, 128], strides = [1, 1]} : vector<32x1024xf32> to vector<32x128xf32>
    %17 = vector.extract_strided_slice %15 {offsets = [0, 128], sizes = [32, 128], strides = [1, 1]} : vector<32x1024xf32> to vector<32x128xf32>
    %18 = arith.maximumf %16, %17 : vector<32x128xf32>
    %19 = vector.extract_strided_slice %15 {offsets = [0, 256], sizes = [32, 128], strides = [1, 1]} : vector<32x1024xf32> to vector<32x128xf32>
    %20 = arith.maximumf %18, %19 : vector<32x128xf32>
    %21 = vector.extract_strided_slice %15 {offsets = [0, 384], sizes = [32, 128], strides = [1, 1]} : vector<32x1024xf32> to vector<32x128xf32>
    %22 = arith.maximumf %20, %21 : vector<32x128xf32>
    %23 = vector.extract_strided_slice %15 {offsets = [0, 512], sizes = [32, 128], strides = [1, 1]} : vector<32x1024xf32> to vector<32x128xf32>
    %24 = arith.maximumf %22, %23 : vector<32x128xf32>
    %25 = vector.extract_strided_slice %15 {offsets = [0, 640], sizes = [32, 128], strides = [1, 1]} : vector<32x1024xf32> to vector<32x128xf32>
    %26 = arith.maximumf %24, %25 : vector<32x128xf32>
    %27 = vector.extract_strided_slice %15 {offsets = [0, 768], sizes = [32, 128], strides = [1, 1]} : vector<32x1024xf32> to vector<32x128xf32>
    %28 = arith.maximumf %26, %27 : vector<32x128xf32>
    %29 = vector.extract_strided_slice %15 {offsets = [0, 896], sizes = [32, 128], strides = [1, 1]} : vector<32x1024xf32> to vector<32x128xf32>
    %30 = arith.maximumf %28, %29 : vector<32x128xf32>
    %c0_12 = arith.constant 0 : index
    %c0_13 = arith.constant 0 : index
    %31 = vector.load %arg6[%c0_12, %c0_13] : memref<32x128xf32, #tpu.memory_space<vmem>>, vector<32x128xf32>
    tpu.vector_store %arg6[%c0_12, %c0_13], %30 {strides = array<i32>} : memref<32x128xf32, #tpu.memory_space<vmem>>, vector<32x128xf32>,
    return
  }
  func.func @transform_0(%arg0: i32) -> (i32, i32) {
    %c0_i32 = arith.constant 0 : i32
    %c0_i32_0 = arith.constant 0 : i32
    return %c0_i32, %arg0 : i32, i32
  }
  func.func @transform_1(%arg0: i32) -> (i32, i32) {
    %c0_i32 = arith.constant 0 : i32
    %c0_i32_0 = arith.constant 0 : i32
    %c0_i32_1 = arith.constant 0 : i32
    return %c0_i32, %c0_i32_0 : i32, i32
  }
  func.func @transform_2(%arg0: i32) -> (i32, i32) {
    %c0_i32 = arith.constant 0 : i32
    %c0_i32_0 = arith.constant 0 : i32
    %c0_i32_1 = arith.constant 0 : i32
    return %c0_i32, %c0_i32_0 : i32, i32
  }
  func.func @transform_3(%arg0: i32) -> (i32, i32) {
    %c0_i32 = arith.constant 0 : i32
    %c0_i32_0 = arith.constant 0 : i32
    %c0_i32_1 = arith.constant 0 : i32
    return %c0_i32, %c0_i32_0 : i32, i32
  }
  func.func @transform_4(%arg0: i32) -> (i32, i32) {
    %c0_i32 = arith.constant 0 : i32
    %c0_i32_0 = arith.constant 0 : i32
    %c0_i32_1 = arith.constant 0 : i32
    return %c0_i32, %c0_i32_0 : i32, i32
  }
  func.func @transform_5(%arg0: i32) -> (i32, i32) {
    %c0_i32 = arith.constant 0 : i32
    %c0_i32_0 = arith.constant 0 : i32
    return %c0_i32, %arg0 : i32, i32
  }
}

</mosaic_0001>

<llo_original>
// kernel: custom-call.6
$region0: #{custom-call.6}
  %s0 = inlined_call_operand.vmem [shape: f32[2,64], index: 0, kind: output, shape index: {}]

// kernel: neg.1
$region0: #{neg.1}
  #allocation0 [shape = 's32[1]{0}', space=sflag, size = 0x4, scoped, tag = 'scoped memory for neg.1']
  %s0 = inlined_call_operand.vmem [shape: f32[2,16,64], index: 0, kind: input, shape index: {}]
  %s1 = inlined_call_operand.vmem [shape: f32[2,16,64], index: 1, kind: output, shape index: {}]
  %v2 = vld [vmem:[%s0] sm:$0xff]
  %3 = xla_tuple %v2
  %4 = xla_tuple %3
  %v5 = vxor.u32 %v2, 2147483648
  %6 = xla_tuple %v5
  %7 = vst [vmem:[%s1] sm:$0xff] %v5
  %s8 = scalar_lea.vmem %s0, 16
  %v9 = vld [vmem:[%s8] sm:$0xff]
  %10 = xla_tuple %v9
  %11 = xla_tuple %10
  %v12 = vxor.u32 %v9, 2147483648
  %13 = xla_tuple %v12
  %s14 = scalar_lea.vmem %s1, 16
  %15 = vst [vmem:[%s14] sm:$0xff] %v12
  %s16 = scalar_lea.vmem %s0, 8
  %v17 = vld [vmem:[%s16] sm:$0xff]
  %18 = xla_tuple %v17
  %19 = xla_tuple %18
  %v20 = vxor.u32 %v17, 2147483648
  %21 = xla_tuple %v20
  %s22 = scalar_lea.vmem %s1, 8
  %23 = vst [vmem:[%s22] sm:$0xff] %v20
  %s24 = scalar_lea.vmem %s0, 24
  %v25 = vld [vmem:[%s24] sm:$0xff]
  %26 = xla_tuple %v25
  %27 = xla_tuple %26
  %v28 = vxor.u32 %v25, 2147483648
  %29 = xla_tuple %v28
  %s30 = scalar_lea.vmem %s1, 24
  %31 = vst [vmem:[%s30] sm:$0xff] %v28

// kernel: transition_down_forward.1
$region0: #{transition_down_forward.1}
  #allocation0 [shape = 'u32[]', space=smem, size = 0x4, offset = 0x4, fixed_abs, tag = 'smem constant byte address 0x4 - core index']
  #allocation1 [shape = 'u32[144,128]{1,0:T(1,128)}', space=vmem, size = 0x12000, scoped, tag = 'internal scratch']
  %s0 = inlined_call_operand.vmem [shape: bf16[8,1024], index: 0, kind: input, shape index: {}]
  %s1 = inlined_call_operand.vmem [shape: bf16[32,8], index: 1, kind: input, shape index: {}]
  %s2 = inlined_call_operand.vmem [shape: f32[32,1], index: 2, kind: input, shape index: {}]
  %s3 = inlined_call_operand.vmem [shape: bf16[32,32], index: 3, kind: input, shape index: {}]
  %s4 = inlined_call_operand.vmem [shape: f32[32,1], index: 4, kind: input, shape index: {}]
  %s5 = inlined_call_operand.vmem [shape: f32[32,128], index: 5, kind: output, shape index: {}]
  %s6 = sld [smem:[#allocation0]]
  $region30: #{transition_down_forward.1} parent=0
    _
  %s8 = ssub.s32 1, %s6
  %s9 = scalar_select 0, %s8, %s6
  // Predicated region
  $region2: #{transition_down_forward.1} parent=0 // pred_check
    _
  $region3: #{transition_down_forward.1} parent=0 // pred_check_branch
    %11 = sbr.rel (0) target = $region5
  $region4: #{transition_down_forward.1} parent=0 // pred_region
    _
  $region5: #{transition_down_forward.1} parent=0 // pred_fallthru
    _
  // Predicated region
  $region6: #{transition_down_forward.1} parent=0 // pred_check
    _
  $region7: #{transition_down_forward.1} parent=0 // pred_check_branch
    %13 = sbr.rel (0) target = $region9
  $region8: #{transition_down_forward.1} parent=0 // pred_region
    _
  $region9: #{transition_down_forward.1} parent=0 // pred_fallthru
    _
  // Predicated region
  $region10: #{transition_down_forward.1} parent=0 // pred_check
    _
  $region11: #{transition_down_forward.1} parent=0 // pred_check_branch
    %15 = sbr.rel (0) target = $region13
  $region12: #{transition_down_forward.1} parent=0 // pred_region
    _
  $region13: #{transition_down_forward.1} parent=0 // pred_fallthru
    _
  // Predicated region
  $region14: #{transition_down_forward.1} parent=0 // pred_check
    _
  $region15: #{transition_down_forward.1} parent=0 // pred_check_branch
    %17 = sbr.rel (0) target = $region17
  $region16: #{transition_down_forward.1} parent=0 // pred_region
    _
  $region17: #{transition_down_forward.1} parent=0 // pred_fallthru
    _
  // Predicated region
  $region18: #{transition_down_forward.1} parent=0 // pred_check
    _
  $region19: #{transition_down_forward.1} parent=0 // pred_check_branch
    %19 = sbr.rel (0) target = $region21
  $region20: #{transition_down_forward.1} parent=0 // pred_region
    _
  $region21: #{transition_down_forward.1} parent=0 // pred_fallthru
    _
  %v21 = vld [vmem:[%s1] sm:$0xf]
  %v22 = vld [vmem:[%s1 + $0x4] sm:$0xf]
  %v23 = vld [vmem:[%s1 + $0x8] sm:$0xf]
  %v24 = vld [vmem:[%s1 + $0xc] sm:$0xf]
  %v25 = vld [vmem:[%s0] sm:$0xff]
  %v26 = vld [vmem:[%s0 + $0x8] sm:$0xff]
  %v27 = vld [vmem:[%s0 + $0x10] sm:$0xff]
  %v28 = vld [vmem:[%s0 + $0x18] sm:$0xff]
  %v29 = vld [vmem:[%s2] sm:$0xff]
  %v30 = vld [vmem:[%s2 + $0x8] sm:$0xff]
  %v31 = vld [vmem:[%s2 + $0x10] sm:$0xff]
  %v32 = vld [vmem:[%s2 + $0x18] sm:$0xff]
  %34 = vset.pattern.permute.xlu0 0
  %35 = vperm.xlu0 %34, %v29
  %v36 = vpop.permute.xlu0 %35
  %39 = vset.pattern.permute.xlu0 0
  %40 = vperm.xlu0 %39, %v30
  %v41 = vpop.permute.xlu0 %40
  %44 = vset.pattern.permute.xlu0 0
  %45 = vperm.xlu0 %44, %v31
  %v46 = vpop.permute.xlu0 %45
  %49 = vset.pattern.permute.xlu0 0
  %50 = vperm.xlu0 %49, %v32
  %v51 = vpop.permute.xlu0 %50
  %v57 = vunpack.c.l.b16 %v21
  %v58 = vunpack.c.l.b16 %v22
  %v59 = vunpack.c.l.b16 %v23
  %v60 = vunpack.c.l.b16 %v24
  %v61 = vpack.c.b16 %v58, %v57
  %v62 = vpack.c.b16 %v60, %v59
  %v67 = vunpack.c.l.b16 %v25
  %v68 = vunpack.c.h.b16 %v25
  %v69 = vunpack.c.l.b16 %v26
  %v70 = vunpack.c.h.b16 %v26
  %v71 = vunpack.c.l.b16 %v27
  %v72 = vunpack.c.h.b16 %v27
  %v73 = vunpack.c.l.b16 %v28
  %v74 = vunpack.c.h.b16 %v28
  %v75 = vpack.c.b16 %v67, %v67
  %v76 = vpack.c.b16 %v68, %v68
  %v77 = vpack.c.b16 %v69, %v69
  %v78 = vpack.c.b16 %v70, %v70
  %v79 = vpack.c.b16 %v71, %v71
  %v80 = vpack.c.b16 %v72, %v72
  %v81 = vpack.c.b16 %v73, %v73
  %v82 = vpack.c.b16 %v74, %v74
  %vm83 = vcmask 64512
  %v85 = vsel %vm83, %v61, 0
  %v88 = vsel %vm83, %v62, 0
  %vm90 = vcmask 1043456
  %v92 = vsel %vm90, %v75, 0
  %v95 = vsel %vm90, %v76, 0
  %v98 = vsel %vm90, %v77, 0
  %v101 = vsel %vm90, %v78, 0
  %v104 = vsel %vm90, %v79, 0
  %v107 = vsel %vm90, %v80, 0
  %v110 = vsel %vm90, %v81, 0
  %v113 = vsel %vm90, %v82, 0
  %115 = vmatprep.subr.bf16.mxu0 0
  %116 = vmatpush1.bf16.msra.mxu0 0
  %117 = vmatprep.subr.bf16.mxu0 0
  %118 = vmatpush1.bf16.msra.mxu0 0
  %119 = vmatprep.subr.bf16.mxu0 0
  %120 = vmatpush1.bf16.msra.mxu0 0
  %121 = vmatprep.subr.bf16.mxu0 0
  %122 = vmatpush1.bf16.msra.mxu0 0
  %123 = vmatprep.subr.bf16.mxu0 0
  %124 = vmatpush1.bf16.msra.mxu0 0
  %125 = vmatprep.subr.bf16.mxu0 0
  %126 = vmatpush1.bf16.msra.mxu0 0
  %127 = vmatprep.subr.bf16.mxu0 0
  %128 = vmatpush1.bf16.msra.mxu0 0
  %129 = vmatprep.subr.bf16.mxu0 %v95
  %130 = vmatpush1.bf16.msra.mxu0 %v92
  %131 = vmatprep.subr.bf16.mxu0 0
  %132 = vmatpush2.bf16.msra.mxu0 0
  %133 = vmatprep.subr.bf16.mxu0 0
  %134 = vmatpush2.bf16.msra.mxu0 0
  %135 = vmatprep.subr.bf16.mxu0 0
  %136 = vmatpush2.bf16.msra.mxu0 0
  %137 = vmatprep.subr.bf16.mxu0 0
  %138 = vmatpush2.bf16.msra.mxu0 0
  %139 = vmatprep.subr.bf16.mxu0 0
  %140 = vmatpush2.bf16.msra.mxu0 0
  %141 = vmatprep.subr.bf16.mxu0 0
  %142 = vmatpush2.bf16.msra.mxu0 0
  %143 = vmatprep.subr.bf16.mxu0 0
  %144 = vmatpush2.bf16.msra.mxu0 0
  %145 = vmatprep.subr.bf16.mxu0 0
  %146 = vmatpush2.bf16.msra.mxu0 0
  %147 = vmatprep.mubr.bf16.mxu0 0
  %148 = vmatmul.mubr.bf16.gmra.mxu0 %v85
  %v149 = vpop.f32.mrf.mxu0
  %v150 = vadd.f32 %v36, %v149
  %v151 = vpop.f32.mrf.mxu0
  %v152 = vadd.f32 %v36, %v151
  %v153 = vpop.f32.mrf.mxu0
  %v154 = vadd.f32 %v41, %v153
  %v155 = vpop.f32.mrf.mxu0
  %v156 = vadd.f32 %v41, %v155
  %157 = vmatprep.mubr.bf16.mxu0 0
  %158 = vmatmul.mubr.bf16.gmra.mxu0 %v88
  %v159 = vpop.f32.mrf.mxu0
  %v160 = vadd.f32 %v46, %v159
  %v161 = vpop.f32.mrf.mxu0
  %v162 = vadd.f32 %v46, %v161
  %v163 = vpop.f32.mrf.mxu0
  %v164 = vadd.f32 %v51, %v163
  %v165 = vpop.f32.mrf.mxu0
  %v166 = vadd.f32 %v51, %v165
  %167 = vdwg.mxu0
  %168 = vmatprep.subr.bf16.mxu0 0
  %169 = vmatpush1.bf16.msra.mxu0 0
  %170 = vmatprep.subr.bf16.mxu0 0
  %171 = vmatpush1.bf16.msra.mxu0 0
  %172 = vmatprep.subr.bf16.mxu0 0
  %173 = vmatpush1.bf16.msra.mxu0 0
  %174 = vmatprep.subr.bf16.mxu0 0
  %175 = vmatpush1.bf16.msra.mxu0 0
  %176 = vmatprep.subr.bf16.mxu0 0
  %177 = vmatpush1.bf16.msra.mxu0 0
  %178 = vmatprep.subr.bf16.mxu0 0
  %179 = vmatpush1.bf16.msra.mxu0 0
  %180 = vmatprep.subr.bf16.mxu0 0
  %181 = vmatpush1.bf16.msra.mxu0 0
  %182 = vmatprep.subr.bf16.mxu0 %v101
  %183 = vmatpush1.bf16.msra.mxu0 %v98
  %184 = vmatprep.subr.bf16.mxu0 0
  %185 = vmatpush2.bf16.msra.mxu0 0
  %186 = vmatprep.subr.bf16.mxu0 0
  %187 = vmatpush2.bf16.msra.mxu0 0
  %188 = vmatprep.subr.bf16.mxu0 0
  %189 = vmatpush2.bf16.msra.mxu0 0
  %190 = vmatprep.subr.bf16.mxu0 0
  %191 = vmatpush2.bf16.msra.mxu0 0
  %192 = vmatprep.subr.bf16.mxu0 0
  %193 = vmatpush2.bf16.msra.mxu0 0
  %194 = vmatprep.subr.bf16.mxu0 0
  %195 = vmatpush2.bf16.msra.mxu0 0
  %196 = vmatprep.subr.bf16.mxu0 0
  %197 = vmatpush2.bf16.msra.mxu0 0
  %198 = vmatprep.subr.bf16.mxu0 0
  %199 = vmatpush2.bf16.msra.mxu0 0
  %200 = vmatprep.mubr.bf16.mxu0 0
  %201 = vmatmul.mubr.bf16.gmra.mxu0 %v85
  %v202 = vpop.f32.mrf.mxu0
  %v203 = vadd.f32 %v36, %v202
  %v204 = vpop.f32.mrf.mxu0
  %v205 = vadd.f32 %v36, %v204
  %v206 = vpop.f32.mrf.mxu0
  %v207 = vadd.f32 %v41, %v206
  %v208 = vpop.f32.mrf.mxu0
  %v209 = vadd.f32 %v41, %v208
  %210 = vmatprep.mubr.bf16.mxu0 0
  %211 = vmatmul.mubr.bf16.gmra.mxu0 %v88
  %v212 = vpop.f32.mrf.mxu0
  %v213 = vadd.f32 %v46, %v212
  %v214 = vpop.f32.mrf.mxu0
  %v215 = vadd.f32 %v46, %v214
  %v216 = vpop.f32.mrf.mxu0
  %v217 = vadd.f32 %v51, %v216
  %v218 = vpop.f32.mrf.mxu0
  %v219 = vadd.f32 %v51, %v218
  %220 = vdwg.mxu0
  %221 = vmatprep.subr.bf16.mxu0 0
  %222 = vmatpush1.bf16.msra.mxu0 0
  %223 = vmatprep.subr.bf16.mxu0 0
  %224 = vmatpush1.bf16.msra.mxu0 0
  %225 = vmatprep.subr.bf16.mxu0 0
  %226 = vmatpush1.bf16.msra.mxu0 0
  %227 = vmatprep.subr.bf16.mxu0 0
  %228 = vmatpush1.bf16.msra.mxu0 0
  %229 = vmatprep.subr.bf16.mxu0 0
  %230 = vmatpush1.bf16.msra.mxu0 0
  %231 = vmatprep.subr.bf16.mxu0 0
  %232 = vmatpush1.bf16.msra.mxu0 0
  %233 = vmatprep.subr.bf16.mxu0 0
  %234 = vmatpush1.bf16.msra.mxu0 0
  %235 = vmatprep.subr.bf16.mxu0 %v107
  %236 = vmatpush1.bf16.msra.mxu0 %v104
  %237 = vmatprep.subr.bf16.mxu0 0
  %238 = vmatpush2.bf16.msra.mxu0 0
  %239 = vmatprep.subr.bf16.mxu0 0
  %240 = vmatpush2.bf16.msra.mxu0 0
  %241 = vmatprep.subr.bf16.mxu0 0
  %242 = vmatpush2.bf16.msra.mxu0 0
  %243 = vmatprep.subr.bf16.mxu0 0
  %244 = vmatpush2.bf16.msra.mxu0 0
  %245 = vmatprep.subr.bf16.mxu0 0
  %246 = vmatpush2.bf16.msra.mxu0 0
  %247 = vmatprep.subr.bf16.mxu0 0
  %248 = vmatpush2.bf16.msra.mxu0 0
  %249 = vmatprep.subr.bf16.mxu0 0
  %250 = vmatpush2.bf16.msra.mxu0 0
  %251 = vmatprep.subr.bf16.mxu0 0
  %252 = vmatpush2.bf16.msra.mxu0 0
  %253 = vmatprep.mubr.bf16.mxu0 0
  %254 = vmatmul.mubr.bf16.gmra.mxu0 %v85
  %v255 = vpop.f32.mrf.mxu0
  %v256 = vadd.f32 %v36, %v255
  %v257 = vpop.f32.mrf.mxu0
  %v258 = vadd.f32 %v36, %v257
  %v259 = vpop.f32.mrf.mxu0
  %v260 = vadd.f32 %v41, %v259
  %v261 = vpop.f32.mrf.mxu0
  %v262 = vadd.f32 %v41, %v261
  %263 = vmatprep.mubr.bf16.mxu0 0
  %264 = vmatmul.mubr.bf16.gmra.mxu0 %v88
  %v265 = vpop.f32.mrf.mxu0
  %v266 = vadd.f32 %v46, %v265
  %v267 = vpop.f32.mrf.mxu0
  %v268 = vadd.f32 %v46, %v267
  %v269 = vpop.f32.mrf.mxu0
  %v270 = vadd.f32 %v51, %v269
  %v271 = vpop.f32.mrf.mxu0
  %v272 = vadd.f32 %v51, %v271
  %273 = vdwg.mxu0
  %274 = vmatprep.subr.bf16.mxu0 0
  %275 = vmatpush1.bf16.msra.mxu0 0
  %276 = vmatprep.subr.bf16.mxu0 0
  %277 = vmatpush1.bf16.msra.mxu0 0
  %278 = vmatprep.subr.bf16.mxu0 0
  %279 = vmatpush1.bf16.msra.mxu0 0
  %280 = vmatprep.subr.bf16.mxu0 0
  %281 = vmatpush1.bf16.msra.mxu0 0
  %282 = vmatprep.subr.bf16.mxu0 0
  %283 = vmatpush1.bf16.msra.mxu0 0
  %284 = vmatprep.subr.bf16.mxu0 0
  %285 = vmatpush1.bf16.msra.mxu0 0
  %286 = vmatprep.subr.bf16.mxu0 0
  %287 = vmatpush1.bf16.msra.mxu0 0
  %288 = vmatprep.subr.bf16.mxu0 %v113
  %289 = vmatpush1.bf16.msra.mxu0 %v110
  %290 = vmatprep.subr.bf16.mxu0 0
  %291 = vmatpush2.bf16.msra.mxu0 0
  %292 = vmatprep.subr.bf16.mxu0 0
  %293 = vmatpush2.bf16.msra.mxu0 0
  %294 = vmatprep.subr.bf16.mxu0 0
  %295 = vmatpush2.bf16.msra.mxu0 0
  %296 = vmatprep.subr.bf16.mxu0 0
  %297 = vmatpush2.bf16.msra.mxu0 0
  %298 = vmatprep.subr.bf16.mxu0 0
  %299 = vmatpush2.bf16.msra.mxu0 0
  %300 = vmatprep.subr.bf16.mxu0 0
  %301 = vmatpush2.bf16.msra.mxu0 0
  %302 = vmatprep.subr.bf16.mxu0 0
  %303 = vmatpush2.bf16.msra.mxu0 0
  %304 = vmatprep.subr.bf16.mxu0 0
  %305 = vmatpush2.bf16.msra.mxu0 0
  %306 = vmatprep.mubr.bf16.mxu0 0
  %307 = vmatmul.mubr.bf16.gmra.mxu0 %v85
  %v308 = vpop.f32.mrf.mxu0
  %v309 = vadd.f32 %v36, %v308
  %v310 = vpop.f32.mrf.mxu0
  %v311 = vadd.f32 %v36, %v310
  %v312 = vpop.f32.mrf.mxu0
  %v313 = vadd.f32 %v41, %v312
  %v314 = vpop.f32.mrf.mxu0
  %v315 = vadd.f32 %v41, %v314
  %316 = vmatprep.mubr.bf16.mxu0 0
  %317 = vmatmul.mubr.bf16.gmra.mxu0 %v88
  %v318 = vpop.f32.mrf.mxu0
  %v319 = vadd.f32 %v46, %v318
  %v320 = vpop.f32.mrf.mxu0
  %v321 = vadd.f32 %v46, %v320
  %v322 = vpop.f32.mrf.mxu0
  %v323 = vadd.f32 %v51, %v322
  %v324 = vpop.f32.mrf.mxu0
  %v325 = vadd.f32 %v51, %v324
  %326 = vdwg.mxu0
  %v327 = vmax.f32 %v150, 0.0
  %v328 = vmax.f32 %v152, 0.0
  %v329 = vmax.f32 %v203, 0.0
  %v330 = vmax.f32 %v205, 0.0
  %v331 = vmax.f32 %v256, 0.0
  %v332 = vmax.f32 %v258, 0.0
  %v333 = vmax.f32 %v309, 0.0
  %v334 = vmax.f32 %v311, 0.0
  %v335 = vmax.f32 %v154, 0.0
  %v336 = vmax.f32 %v156, 0.0
  %v337 = vmax.f32 %v207, 0.0
  %v338 = vmax.f32 %v209, 0.0
  %v339 = vmax.f32 %v260, 0.0
  %v340 = vmax.f32 %v262, 0.0
  %v341 = vmax.f32 %v313, 0.0
  %v342 = vmax.f32 %v315, 0.0
  %v343 = vmax.f32 %v160, 0.0
  %v344 = vmax.f32 %v162, 0.0
  %v345 = vmax.f32 %v213, 0.0
  %v346 = vmax.f32 %v215, 0.0
  %v347 = vmax.f32 %v266, 0.0
  %v348 = vmax.f32 %v268, 0.0
  %v349 = vmax.f32 %v319, 0.0
  %v350 = vmax.f32 %v321, 0.0
  %v351 = vmax.f32 %v164, 0.0
  %v352 = vmax.f32 %v166, 0.0
  %v353 = vmax.f32 %v217, 0.0
  %v354 = vmax.f32 %v219, 0.0
  %v355 = vmax.f32 %v270, 0.0
  %v356 = vmax.f32 %v272, 0.0
  %v357 = vmax.f32 %v323, 0.0
  %v358 = vmax.f32 %v325, 0.0
  %v359 = vld [vmem:[%s3] sm:$0xf]
  %v360 = vld [vmem:[%s3 + $0x4] sm:$0xf]
  %v361 = vld [vmem:[%s3 + $0x8] sm:$0xf]
  %v362 = vld [vmem:[%s3 + $0xc] sm:$0xf]
  %v363 = vpack.c.bf16 %v335, %v327
  %v364 = vpack.c.bf16 %v336, %v328
  %v365 = vpack.c.bf16 %v337, %v329
  %v366 = vpack.c.bf16 %v338, %v330
  %v367 = vpack.c.bf16 %v339, %v331
  %v368 = vpack.c.bf16 %v340, %v332
  %v369 = vpack.c.bf16 %v341, %v333
  %v370 = vpack.c.bf16 %v342, %v334
  %v371 = vpack.c.bf16 %v351, %v343
  %v372 = vpack.c.bf16 %v352, %v344
  %v373 = vpack.c.bf16 %v353, %v345
  %v374 = vpack.c.bf16 %v354, %v346
  %v375 = vpack.c.bf16 %v355, %v347
  %v376 = vpack.c.bf16 %v356, %v348
  %v377 = vpack.c.bf16 %v357, %v349
  %v378 = vpack.c.bf16 %v358, %v350
  %v379 = vld [vmem:[%s4] sm:$0xff]
  %v380 = vld [vmem:[%s4 + $0x8] sm:$0xff]
  %v381 = vld [vmem:[%s4 + $0x10] sm:$0xff]
  %v382 = vld [vmem:[%s4 + $0x18] sm:$0xff]
  %384 = vset.pattern.permute.xlu0 0
  %385 = vperm.xlu0 %384, %v379
  %v386 = vpop.permute.xlu0 %385
  %389 = vset.pattern.permute.xlu0 0
  %390 = vperm.xlu0 %389, %v380
  %v391 = vpop.permute.xlu0 %390
  %394 = vset.pattern.permute.xlu0 0
  %395 = vperm.xlu0 %394, %v381
  %v396 = vpop.permute.xlu0 %395
  %399 = vset.pattern.permute.xlu0 0
  %400 = vperm.xlu0 %399, %v382
  %v401 = vpop.permute.xlu0 %400
  %v407 = vunpack.c.l.b16 %v359
  %v408 = vunpack.c.l.b16 %v360
  %v409 = vunpack.c.l.b16 %v361
  %v410 = vunpack.c.l.b16 %v362
  %v411 = vpack.c.b16 %v408, %v407
  %v412 = vpack.c.b16 %v410, %v409
  %vm413 = vcmask 261120
  %v415 = vsel %vm413, %v411, 0
  %v418 = vsel %vm413, %v412, 0
  %420 = vmatprep.subr.bf16.mxu0 0
  %421 = vmatpush1.bf16.msra.mxu0 0
  %422 = vmatprep.subr.bf16.mxu0 0
  %423 = vmatpush1.bf16.msra.mxu0 0
  %424 = vmatprep.subr.bf16.mxu0 0
  %425 = vmatpush1.bf16.msra.mxu0 0
  %426 = vmatprep.subr.bf16.mxu0 0
  %427 = vmatpush1.bf16.msra.mxu0 0
  %428 = vmatprep.subr.bf16.mxu0 0
  %429 = vmatpush1.bf16.msra.mxu0 0
  %430 = vmatprep.subr.bf16.mxu0 0
  %431 = vmatpush1.bf16.msra.mxu0 0
  %432 = vmatprep.subr.bf16.mxu0 %v372
  %433 = vmatpush1.bf16.msra.mxu0 %v371
  %434 = vmatprep.subr.bf16.mxu0 %v364
  %435 = vmatpush1.bf16.msra.mxu0 %v363
  %436 = vmatprep.subr.bf16.mxu0 0
  %437 = vmatpush2.bf16.msra.mxu0 0
  %438 = vmatprep.subr.bf16.mxu0 0
  %439 = vmatpush2.bf16.msra.mxu0 0
  %440 = vmatprep.subr.bf16.mxu0 0
  %441 = vmatpush2.bf16.msra.mxu0 0
  %442 = vmatprep.subr.bf16.mxu0 0
  %443 = vmatpush2.bf16.msra.mxu0 0
  %444 = vmatprep.subr.bf16.mxu0 0
  %445 = vmatpush2.bf16.msra.mxu0 0
  %446 = vmatprep.subr.bf16.mxu0 0
  %447 = vmatpush2.bf16.msra.mxu0 0
  %448 = vmatprep.subr.bf16.mxu0 0
  %449 = vmatpush2.bf16.msra.mxu0 0
  %450 = vmatprep.subr.bf16.mxu0 0
  %451 = vmatpush2.bf16.msra.mxu0 0
  %452 = vmatprep.mubr.bf16.mxu0 0
  %453 = vmatmul.mubr.bf16.gmra.mxu0 %v415
  %v454 = vpop.f32.mrf.mxu0
  %v455 = vadd.f32 %v386, %v454
  %v456 = vpop.f32.mrf.mxu0
  %v457 = vadd.f32 %v386, %v456
  %v458 = vpop.f32.mrf.mxu0
  %v459 = vadd.f32 %v391, %v458
  %v460 = vpop.f32.mrf.mxu0
  %v461 = vadd.f32 %v391, %v460
  %462 = vmatprep.mubr.bf16.mxu0 0
  %463 = vmatmul.mubr.bf16.gmra.mxu0 %v418
  %v464 = vpop.f32.mrf.mxu0
  %v465 = vadd.f32 %v396, %v464
  %v466 = vpop.f32.mrf.mxu0
  %v467 = vadd.f32 %v396, %v466
  %v468 = vpop.f32.mrf.mxu0
  %v469 = vadd.f32 %v401, %v468
  %v470 = vpop.f32.mrf.mxu0
  %v471 = vadd.f32 %v401, %v470
  %472 = vdwg.mxu0
  %473 = vmatprep.subr.bf16.mxu0 0
  %474 = vmatpush1.bf16.msra.mxu0 0
  %475 = vmatprep.subr.bf16.mxu0 0
  %476 = vmatpush1.bf16.msra.mxu0 0
  %477 = vmatprep.subr.bf16.mxu0 0
  %478 = vmatpush1.bf16.msra.mxu0 0
  %479 = vmatprep.subr.bf16.mxu0 0
  %480 = vmatpush1.bf16.msra.mxu0 0
  %481 = vmatprep.subr.bf16.mxu0 0
  %482 = vmatpush1.bf16.msra.mxu0 0
  %483 = vmatprep.subr.bf16.mxu0 0
  %484 = vmatpush1.bf16.msra.mxu0 0
  %485 = vmatprep.subr.bf16.mxu0 %v374
  %486 = vmatpush1.bf16.msra.mxu0 %v373
  %487 = vmatprep.subr.bf16.mxu0 %v366
  %488 = vmatpush1.bf16.msra.mxu0 %v365
  %489 = vmatprep.subr.bf16.mxu0 0
  %490 = vmatpush2.bf16.msra.mxu0 0
  %491 = vmatprep.subr.bf16.mxu0 0
  %492 = vmatpush2.bf16.msra.mxu0 0
  %493 = vmatprep.subr.bf16.mxu0 0
  %494 = vmatpush2.bf16.msra.mxu0 0
  %495 = vmatprep.subr.bf16.mxu0 0
  %496 = vmatpush2.bf16.msra.mxu0 0
  %497 = vmatprep.subr.bf16.mxu0 0
  %498 = vmatpush2.bf16.msra.mxu0 0
  %499 = vmatprep.subr.bf16.mxu0 0
  %500 = vmatpush2.bf16.msra.mxu0 0
  %501 = vmatprep.subr.bf16.mxu0 0
  %502 = vmatpush2.bf16.msra.mxu0 0
  %503 = vmatprep.subr.bf16.mxu0 0
  %504 = vmatpush2.bf16.msra.mxu0 0
  %505 = vmatprep.mubr.bf16.mxu0 0
  %506 = vmatmul.mubr.bf16.gmra.mxu0 %v415
  %v507 = vpop.f32.mrf.mxu0
  %v508 = vadd.f32 %v386, %v507
  %v509 = vpop.f32.mrf.mxu0
  %v510 = vadd.f32 %v386, %v509
  %v511 = vpop.f32.mrf.mxu0
  %v512 = vadd.f32 %v391, %v511
  %v513 = vpop.f32.mrf.mxu0
  %v514 = vadd.f32 %v391, %v513
  %515 = vmatprep.mubr.bf16.mxu0 0
  %516 = vmatmul.mubr.bf16.gmra.mxu0 %v418
  %v517 = vpop.f32.mrf.mxu0
  %v518 = vadd.f32 %v396, %v517
  %v519 = vpop.f32.mrf.mxu0
  %v520 = vadd.f32 %v396, %v519
  %v521 = vpop.f32.mrf.mxu0
  %v522 = vadd.f32 %v401, %v521
  %v523 = vpop.f32.mrf.mxu0
  %v524 = vadd.f32 %v401, %v523
  %525 = vdwg.mxu0
  %526 = vmatprep.subr.bf16.mxu0 0
  %527 = vmatpush1.bf16.msra.mxu0 0
  %528 = vmatprep.subr.bf16.mxu0 0
  %529 = vmatpush1.bf16.msra.mxu0 0
  %530 = vmatprep.subr.bf16.mxu0 0
  %531 = vmatpush1.bf16.msra.mxu0 0
  %532 = vmatprep.subr.bf16.mxu0 0
  %533 = vmatpush1.bf16.msra.mxu0 0
  %534 = vmatprep.subr.bf16.mxu0 0
  %535 = vmatpush1.bf16.msra.mxu0 0
  %536 = vmatprep.subr.bf16.mxu0 0
  %537 = vmatpush1.bf16.msra.mxu0 0
  %538 = vmatprep.subr.bf16.mxu0 %v376
  %539 = vmatpush1.bf16.msra.mxu0 %v375
  %540 = vmatprep.subr.bf16.mxu0 %v368
  %541 = vmatpush1.bf16.msra.mxu0 %v367
  %542 = vmatprep.subr.bf16.mxu0 0
  %543 = vmatpush2.bf16.msra.mxu0 0
  %544 = vmatprep.subr.bf16.mxu0 0
  %545 = vmatpush2.bf16.msra.mxu0 0
  %546 = vmatprep.subr.bf16.mxu0 0
  %547 = vmatpush2.bf16.msra.mxu0 0
  %548 = vmatprep.subr.bf16.mxu0 0
  %549 = vmatpush2.bf16.msra.mxu0 0
  %550 = vmatprep.subr.bf16.mxu0 0
  %551 = vmatpush2.bf16.msra.mxu0 0
  %552 = vmatprep.subr.bf16.mxu0 0
  %553 = vmatpush2.bf16.msra.mxu0 0
  %554 = vmatprep.subr.bf16.mxu0 0
  %555 = vmatpush2.bf16.msra.mxu0 0
  %556 = vmatprep.subr.bf16.mxu0 0
  %557 = vmatpush2.bf16.msra.mxu0 0
  %558 = vmatprep.mubr.bf16.mxu0 0
  %559 = vmatmul.mubr.bf16.gmra.mxu0 %v415
  %v560 = vpop.f32.mrf.mxu0
  %v561 = vadd.f32 %v386, %v560
  %v562 = vpop.f32.mrf.mxu0
  %v563 = vadd.f32 %v386, %v562
  %v564 = vpop.f32.mrf.mxu0
  %v565 = vadd.f32 %v391, %v564
  %v566 = vpop.f32.mrf.mxu0
  %v567 = vadd.f32 %v391, %v566
  %568 = vmatprep.mubr.bf16.mxu0 0
  %569 = vmatmul.mubr.bf16.gmra.mxu0 %v418
  %v570 = vpop.f32.mrf.mxu0
  %v571 = vadd.f32 %v396, %v570
  %v572 = vpop.f32.mrf.mxu0
  %v573 = vadd.f32 %v396, %v572
  %v574 = vpop.f32.mrf.mxu0
  %v575 = vadd.f32 %v401, %v574
  %v576 = vpop.f32.mrf.mxu0
  %v577 = vadd.f32 %v401, %v576
  %578 = vdwg.mxu0
  %579 = vmatprep.subr.bf16.mxu0 0
  %580 = vmatpush1.bf16.msra.mxu0 0
  %581 = vmatprep.subr.bf16.mxu0 0
  %582 = vmatpush1.bf16.msra.mxu0 0
  %583 = vmatprep.subr.bf16.mxu0 0
  %584 = vmatpush1.bf16.msra.mxu0 0
  %585 = vmatprep.subr.bf16.mxu0 0
  %586 = vmatpush1.bf16.msra.mxu0 0
  %587 = vmatprep.subr.bf16.mxu0 0
  %588 = vmatpush1.bf16.msra.mxu0 0
  %589 = vmatprep.subr.bf16.mxu0 0
  %590 = vmatpush1.bf16.msra.mxu0 0
  %591 = vmatprep.subr.bf16.mxu0 %v378
  %592 = vmatpush1.bf16.msra.mxu0 %v377
  %593 = vmatprep.subr.bf16.mxu0 %v370
  %594 = vmatpush1.bf16.msra.mxu0 %v369
  %595 = vmatprep.subr.bf16.mxu0 0
  %596 = vmatpush2.bf16.msra.mxu0 0
  %597 = vmatprep.subr.bf16.mxu0 0
  %598 = vmatpush2.bf16.msra.mxu0 0
  %599 = vmatprep.subr.bf16.mxu0 0
  %600 = vmatpush2.bf16.msra.mxu0 0
  %601 = vmatprep.subr.bf16.mxu0 0
  %602 = vmatpush2.bf16.msra.mxu0 0
  %603 = vmatprep.subr.bf16.mxu0 0
  %604 = vmatpush2.bf16.msra.mxu0 0
  %605 = vmatprep.subr.bf16.mxu0 0
  %606 = vmatpush2.bf16.msra.mxu0 0
  %607 = vmatprep.subr.bf16.mxu0 0
  %608 = vmatpush2.bf16.msra.mxu0 0
  %609 = vmatprep.subr.bf16.mxu0 0
  %610 = vmatpush2.bf16.msra.mxu0 0
  %611 = vmatprep.mubr.bf16.mxu0 0
  %612 = vmatmul.mubr.bf16.gmra.mxu0 %v415
  %v613 = vpop.f32.mrf.mxu0
  %v614 = vadd.f32 %v386, %v613
  %v615 = vpop.f32.mrf.mxu0
  %v616 = vadd.f32 %v386, %v615
  %v617 = vpop.f32.mrf.mxu0
  %v618 = vadd.f32 %v391, %v617
  %v619 = vpop.f32.mrf.mxu0
  %v620 = vadd.f32 %v391, %v619
  %621 = vmatprep.mubr.bf16.mxu0 0
  %622 = vmatmul.mubr.bf16.gmra.mxu0 %v418
  %v623 = vpop.f32.mrf.mxu0
  %v624 = vadd.f32 %v396, %v623
  %v625 = vpop.f32.mrf.mxu0
  %v626 = vadd.f32 %v396, %v625
  %v627 = vpop.f32.mrf.mxu0
  %v628 = vadd.f32 %v401, %v627
  %v629 = vpop.f32.mrf.mxu0
  %v630 = vadd.f32 %v401, %v629
  %631 = vdwg.mxu0
  %v632 = vmax.f32 %v455, 0.0
  %v633 = vmax.f32 %v457, 0.0
  %v634 = vmax.f32 %v508, 0.0
  %v635 = vmax.f32 %v510, 0.0
  %v636 = vmax.f32 %v561, 0.0
  %v637 = vmax.f32 %v563, 0.0
  %v638 = vmax.f32 %v614, 0.0
  %v639 = vmax.f32 %v616, 0.0
  %v640 = vmax.f32 %v459, 0.0
  %v641 = vmax.f32 %v461, 0.0
  %v642 = vmax.f32 %v512, 0.0
  %v643 = vmax.f32 %v514, 0.0
  %v644 = vmax.f32 %v565, 0.0
  %v645 = vmax.f32 %v567, 0.0
  %v646 = vmax.f32 %v618, 0.0
  %v647 = vmax.f32 %v620, 0.0
  %v648 = vmax.f32 %v465, 0.0
  %v649 = vmax.f32 %v467, 0.0
  %v650 = vmax.f32 %v518, 0.0
  %v651 = vmax.f32 %v520, 0.0
  %v652 = vmax.f32 %v571, 0.0
  %v653 = vmax.f32 %v573, 0.0
  %v654 = vmax.f32 %v624, 0.0
  %v655 = vmax.f32 %v626, 0.0
  %v656 = vmax.f32 %v469, 0.0
  %v657 = vmax.f32 %v471, 0.0
  %v658 = vmax.f32 %v522, 0.0
  %v659 = vmax.f32 %v524, 0.0
  %v660 = vmax.f32 %v575, 0.0
  %v661 = vmax.f32 %v577, 0.0
  %v662 = vmax.f32 %v628, 0.0
  %v663 = vmax.f32 %v630, 0.0
  %v664 = vmax.f32 %v632, %v633
  %v665 = vmax.f32 %v640, %v641
  %v666 = vmax.f32 %v648, %v649
  %v667 = vmax.f32 %v656, %v657
  %v668 = vmax.f32 %v664, %v634
  %v669 = vmax.f32 %v665, %v642
  %v670 = vmax.f32 %v666, %v650
  %v671 = vmax.f32 %v667, %v658
  %v672 = vmax.f32 %v668, %v635
  %v673 = vmax.f32 %v669, %v643
  %v674 = vmax.f32 %v670, %v651
  %v675 = vmax.f32 %v671, %v659
  %v676 = vmax.f32 %v672, %v636
  %v677 = vmax.f32 %v673, %v644
  %v678 = vmax.f32 %v674, %v652
  %v679 = vmax.f32 %v675, %v660
  %v680 = vmax.f32 %v676, %v637
  %v681 = vmax.f32 %v677, %v645
  %v682 = vmax.f32 %v678, %v653
  %v683 = vmax.f32 %v679, %v661
  %v684 = vmax.f32 %v680, %v638
  %v685 = vmax.f32 %v681, %v646
  %v686 = vmax.f32 %v682, %v654
  %v687 = vmax.f32 %v683, %v662
  %v688 = vmax.f32 %v684, %v639
  %v689 = vmax.f32 %v685, %v647
  %v690 = vmax.f32 %v686, %v655
  %v691 = vmax.f32 %v687, %v663
  %692 = vst [vmem:[%s5] sm:$0xff] %v688
  %693 = vst [vmem:[%s5 + $0x8] sm:$0xff] %v689
  %694 = vst [vmem:[%s5 + $0x10] sm:$0xff] %v690
  %695 = vst [vmem:[%s5 + $0x18] sm:$0xff] %v691
  // Predicated region
  $region22: #{transition_down_forward.1} parent=0 // pred_check
    _
  $region23: #{transition_down_forward.1} parent=0 // pred_check_branch
    %697 = sbr.rel (0) target = $region25
  $region24: #{transition_down_forward.1} parent=0 // pred_region
    _
  $region25: #{transition_down_forward.1} parent=0 // pred_fallthru
    _
  // Predicated region
  $region26: #{transition_down_forward.1} parent=0 // pred_check
    _
  $region27: #{transition_down_forward.1} parent=0 // pred_check_branch
    %699 = sbr.rel (0) target = $region29
  $region28: #{transition_down_forward.1} parent=0 // pred_region
    _
  $region29: #{transition_down_forward.1} parent=0 // pred_fallthru
    _

</llo_original>
